<compile_context>
chip_gen: v7x
topology: tpu7x:2x2x1
jax: 0.10.0
libtpu: 0.0.40
codegen_flags: <defaults>
</compile_context>

<pallas_src>
import functools

import jax
import jax.numpy as jnp
from jax.experimental import pallas as pl
from jax.experimental.pallas import tpu as pltpu


# ---------------------------------------------------------------------------
# Kernel: one (tm, tn) output tile of  act(x @ w + b)  per grid step.
# ---------------------------------------------------------------------------
def _gemm_bias_kernel(x_ref, w_ref, b_ref, o_ref, *, apply_tanh):
    # x_ref: (tm, K) bf16   w_ref: (K, tn) bf16   b_ref: (1, tn) f32
    acc = jnp.dot(x_ref[...], w_ref[...], preferred_element_type=jnp.float32)
    acc = acc + b_ref[...]              # broadcast over rows, f32
    if apply_tanh:
        acc = jnp.tanh(acc)             # EUP transcendental, off the MXU/DMA path
    o_ref[...] = acc.astype(o_ref.dtype)


def _vmem_budget_bytes():
    """Generation-aware VMEM budget (v5e/v6e: 128 MiB physical, v7x: 64 MiB)."""
    cap = None
    try:
        cap = getattr(pltpu.get_tpu_info(), "vmem_capacity_bytes", None)
    except Exception:
        cap = None
    if cap is None:
        cap = 64 * 1024 * 1024          # conservative default (v7x-sized)
    if cap >= 100 * 1024 * 1024:        # v5e / v6e
        return 96 * 1024 * 1024
    return 56 * 1024 * 1024             # v7x: stay under its 64 MiB physical VMEM


def _pick_tiles(M, K, N, out_itemsize, budget, max_tm=1024):
    """Pick (tm, tn) for the (M,K)x(K,N) GEMM from an explicit VMEM budget."""
    # tm: cover M with ONE tile whenever it fits — every extra M-tile re-streams
    # the full weight matrix through HBM on this bandwidth-bound GEMM.
    tm = M if M <= max_tm else max_tm
    if N <= 128:
        return tm, N
    for cand in (4096, 2048, 1024, 512, 256, 128):
        tn = min(cand, N)
        if tn % 128 != 0 and tn != N:
            continue
        # double-buffered working set: x tile + w tile + bias tile + out tile
        tile_bytes = 2 * (tm * K * 2 + K * tn * 2 + tn * 4 + tm * tn * out_itemsize)
        if tile_bytes <= budget:
            return tm, tn
    return tm, 128


def _tiled_gemm_bias(x, w, b, *, apply_tanh, out_dtype, weight_buffers=2):
    """out = act(x @ w + b), tiled over (rows of x, columns of w).

    x: (M, K) bf16, w: (K, N) bf16, b: (1, N) f32.  K stays whole (hidden size);
    the weight stream is blocked (K, tn) and pipelined by Pallas.
    """
    M, K = x.shape
    K2, N = w.shape
    assert K == K2 and b.shape == (1, N)

    budget = _vmem_budget_bytes()
    tm, tn = _pick_tiles(M, K, N, jnp.dtype(out_dtype).itemsize, budget)
    grid = (pl.cdiv(M, tm), pl.cdiv(N, tn))

    cost = pl.CostEstimate(
        flops=2 * M * K * N,
        transcendentals=(M * N) if apply_tanh else 0,
        bytes_accessed=(x.size * x.dtype.itemsize
                        + w.size * w.dtype.itemsize
                        + b.size * b.dtype.itemsize
                        + M * N * jnp.dtype(out_dtype).itemsize),
    )

    w_spec_kwargs = {}
    if weight_buffers != 2:
        # Optional deeper weight-stream pipelining (e.g. 3 on v7x) to hide DMA
        # issue latency; verify it still fits the VMEM budget before enabling.
        w_spec_kwargs["pipeline_mode"] = pl.Buffered(weight_buffers)

    kernel = functools.partial(_gemm_bias_kernel, apply_tanh=apply_tanh)
    return pl.pallas_call(
        kernel,
        out_shape=jax.ShapeDtypeStruct((M, N), out_dtype),
        grid=grid,
        in_specs=[
            # activation rows: constant in j -> not re-DMA'd across column tiles
            pl.BlockSpec((tm, K), lambda i, j: (i, 0)),
            # streamed weight tile (the dominant HBM traffic)
            pl.BlockSpec((K, tn), lambda i, j: (0, j), **w_spec_kwargs),
            # matching bias tile
            pl.BlockSpec((1, tn), lambda i, j: (0, j)),
        ],
        out_specs=pl.BlockSpec((tm, tn), lambda i, j: (i, j)),
        compiler_params=pltpu.CompilerParams(
            dimension_semantics=("parallel", "parallel"),
            vmem_limit_bytes=budget,
        ),
        cost_estimate=cost,
    )(x, w, b)


# ---------------------------------------------------------------------------
# Module forward
# ---------------------------------------------------------------------------
def prefix_encoder_forward(prefix_ids, params, *, prefix_projection=True,
                           out_dtype=jnp.float32, weight_buffers=2):
    """prefix_ids: (B, P) int32 token positions.  Returns (B, P, 2*L*H).

    `out_dtype=jnp.bfloat16` halves the projected-table write stream if the
    downstream past_key_values consumer accepts bf16.
    """
    if not prefix_projection:
        # Non-projection branch is a pure embedding gather — no compute hot path.
        return jnp.take(params["embedding"], prefix_ids, axis=0)

    # Batch dedupe: project the small (pre_seq_len, H) embedding TABLE once,
    # then gather the projected rows.  Bitwise-identical semantics to
    # MLP(Embedding(prefix_ids)) since the MLP acts row-wise, but M is
    # independent of batch, so W2 streams from HBM exactly once.
    table = params["embedding"].astype(jnp.bfloat16)          # tiny one-time cast
    h = _tiled_gemm_bias(table, params["w1"], params["b1"],
                         apply_tanh=True, out_dtype=jnp.bfloat16,
                         weight_buffers=weight_buffers)
    proj = _tiled_gemm_bias(h, params["w2"], params["b2"],
                            apply_tanh=False, out_dtype=out_dtype,
                            weight_buffers=weight_buffers)
    # Final row gather (plain-JAX glue): (B, P, 2*L*H).
    return jnp.take(proj, prefix_ids, axis=0)


def init_params(key, *, pre_seq_len, hidden_size, num_hidden_layers):
    """f32 'master' parameters matching the PyTorch module's shapes."""
    k_emb, k_w1, k_b1, k_w2, k_b2 = jax.random.split(key, 5)
    out_dim = num_hidden_layers * hidden_size * 2
    return {
        "embedding": jax.random.normal(k_emb, (pre_seq_len, hidden_size), jnp.float32) * 0.02,
        "w1": jax.random.normal(k_w1, (hidden_size, hidden_size), jnp.float32) * 0.02,
        "b1": jax.random.normal(k_b1, (hidden_size,), jnp.float32) * 0.02,
        "w2": jax.random.normal(k_w2, (hidden_size, out_dim), jnp.float32) * 0.02,
        "b2": jax.random.normal(k_b2, (out_dim,), jnp.float32) * 0.02,
    }


def prepare_params(master):
    """One-time, load-time conversion to inference layout.

    Weights -> bf16 (MXU-native, halves the dominant W2 HBM stream); biases ->
    (1, N) f32.  Done ONCE here instead of per forward call, which previously
    re-read/re-wrote the full f32 W2 from HBM on every invocation.
    """
    return {
        "embedding": master["embedding"],                       # small gather table, f32
        "w1": master["w1"].astype(jnp.bfloat16),
        "b1": master["b1"].reshape(1, -1).astype(jnp.float32),
        "w2": master["w2"].astype(jnp.bfloat16),
        "b2": master["b2"].reshape(1, -1).astype(jnp.float32),
    }


if __name__ == "__main__":
    # Small config consistent with the module's forward:
    #   batch=2, prefix-length=8, pre_seq_len=8, hidden=32, layers=2 -> out dim 128
    batch = 2
    prefix_len = 8
    pre_seq_len = 8
    hidden_size = 32
    num_hidden_layers = 2
    out_dim = 2 * num_hidden_layers * hidden_size

    key = jax.random.PRNGKey(0)
    k_params, k_ids = jax.random.split(key)
    master = init_params(k_params, pre_seq_len=pre_seq_len,
                         hidden_size=hidden_size,
                         num_hidden_layers=num_hidden_layers)
    params = prepare_params(master)    # load-time bf16 conversion (once)
    prefix_ids = jax.random.randint(k_ids, (batch, prefix_len), 0, pre_seq_len, jnp.int32)

    out = prefix_encoder_forward(prefix_ids, params, prefix_projection=True)
    out = jax.block_until_ready(out)
    assert out.shape == (batch, prefix_len, out_dim)

    # Reference 1: emulate the kernel's bf16 compute dtype exactly (f32 accumulate).
    table_b = master["embedding"].astype(jnp.bfloat16).astype(jnp.float32)
    w1_b = master["w1"].astype(jnp.bfloat16).astype(jnp.float32)
    w2_b = master["w2"].astype(jnp.bfloat16).astype(jnp.float32)
    h_ref = jnp.tanh(table_b @ w1_b + master["b1"]).astype(jnp.bfloat16).astype(jnp.float32)
    proj_ref = h_ref @ w2_b + master["b2"]
    ref1 = jnp.take(proj_ref, prefix_ids, axis=0)
    assert jnp.allclose(out, ref1, atol=1e-2, rtol=1e-2)

    # Reference 2: full-f32 math of the original module (loose tol for bf16 cast;
    # at real ChatGLM sizes (K=4096) this tolerance would need widening).
    emb = jnp.take(master["embedding"], prefix_ids, axis=0)
    ref2 = jnp.tanh(emb @ master["w1"] + master["b1"]) @ master["w2"] + master["b2"]
    assert jnp.allclose(out, ref2, atol=5e-3, rtol=5e-3)

    # Non-projection branch (pure embedding gather).
    np_params = {"embedding": jax.random.normal(jax.random.PRNGKey(1),
                                                (pre_seq_len, out_dim), jnp.float32)}
    out_np = prefix_encoder_forward(prefix_ids, np_params, prefix_projection=False)
    out_np = jax.block_until_ready(out_np)
    assert out_np.shape == (batch, prefix_len, out_dim)
    assert jnp.allclose(out_np, jnp.take(np_params["embedding"], prefix_ids, axis=0))

    print("KERNEL_OK")
</pallas_src>

<mosaic_0001>
module attributes {stable_mosaic.version = 11 : i64} {
  func.func @_gemm_bias_kernel(%arg0: i32, %arg1: i32, %arg2: memref<8x32xbf16, #tpu.memory_space<vmem>>, %arg3: memref<32x32xbf16, #tpu.memory_space<vmem>>, %arg4: memref<1x32xf32, #tpu.memory_space<vmem>>, %arg5: memref<8x32xbf16, #tpu.memory_space<vmem>>) attributes {dimension_semantics = [#tpu.dimension_semantics<parallel>, #tpu.dimension_semantics<parallel>], iteration_bounds = array<i64: 1, 1>, scalar_prefetch = 0 : i64, scratch_operands = 0 : i64, tpu.core_type = #tpu.core_type<tc>, window_params = [{transform_indices = @transform_0, window_bounds = array<i64: 8, 32>}, {transform_indices = @transform_1, window_bounds = array<i64: 32, 32>}, {transform_indices = @transform_2, window_bounds = array<i64: 1, 32>}, {transform_indices = @transform_3, window_bounds = array<i64: 8, 32>}]} {
    %c0 = arith.constant 0 : index
    %c0_0 = arith.constant 0 : index
    %0 = vector.load %arg2[%c0, %c0_0] : memref<8x32xbf16, #tpu.memory_space<vmem>>, vector<8x32xbf16>
    %c0_1 = arith.constant 0 : index
    %c0_2 = arith.constant 0 : index
    %1 = vector.load %arg3[%c0_1, %c0_2] : memref<32x32xbf16, #tpu.memory_space<vmem>>, vector<32x32xbf16>
    %cst = arith.constant dense<0.000000e+00> : vector<8x32xf32>
    %2 = tpu.matmul %0, %1, %cst {dimension_numbers = #tpu.dot_dimension_numbers<[1], [0], [0], [1], [0, 0, 1, 1], [], []>} : vector<8x32xbf16>, vector<32x32xbf16>, vector<8x32xf32> -> vector<8x32xf32>
    %c0_3 = arith.constant 0 : index
    %c0_4 = arith.constant 0 : index
    %3 = vector.load %arg4[%c0_3, %c0_4] : memref<1x32xf32, #tpu.memory_space<vmem>>, vector<1x32xf32>
    %4 = vector.broadcast %3 : vector<1x32xf32> to vector<8x32xf32>
    %5 = arith.addf %2, %4 : vector<8x32xf32>
    %6 = math.tanh %5 : vector<8x32xf32>
    %7 = arith.truncf %6 : vector<8x32xf32> to vector<8x32xbf16>
    %c0_5 = arith.constant 0 : index
    %c0_6 = arith.constant 0 : index
    %8 = vector.load %arg5[%c0_5, %c0_6] : memref<8x32xbf16, #tpu.memory_space<vmem>>, vector<8x32xbf16>
    tpu.vector_store %arg5[%c0_5, %c0_6], %7 {strides = array<i32>} : memref<8x32xbf16, #tpu.memory_space<vmem>>, vector<8x32xbf16>,
    return
  }
  func.func @transform_0(%arg0: i32, %arg1: i32) -> (i32, i32) {
    %c0_i32 = arith.constant 0 : i32
    %c0_i32_0 = arith.constant 0 : i32
    return %arg0, %c0_i32 : i32, i32
  }
  func.func @transform_1(%arg0: i32, %arg1: i32) -> (i32, i32) {
    %c0_i32 = arith.constant 0 : i32
    %c0_i32_0 = arith.constant 0 : i32
    return %c0_i32, %arg1 : i32, i32
  }
  func.func @transform_2(%arg0: i32, %arg1: i32) -> (i32, i32) {
    %c0_i32 = arith.constant 0 : i32
    %c0_i32_0 = arith.constant 0 : i32
    return %c0_i32, %arg1 : i32, i32
  }
  func.func @transform_3(%arg0: i32, %arg1: i32) -> (i32, i32) {
    %c0_i32 = arith.constant 0 : i32
    return %arg0, %arg1 : i32, i32
  }
}

</mosaic_0001>

<llo_original>
// kernel: tpu_custom_call.1
$region0: #{tpu_custom_call.1}
  #allocation0 [shape = 'u32[]', space=smem, size = 0x4, offset = 0x4, fixed_abs, tag = 'smem constant byte address 0x4 - core index']
  #allocation1 [shape = 'u32[144,128]{1,0:T(1,128)}', space=vmem, size = 0x12000, scoped, tag = 'internal scratch']
  %s0 = inlined_call_operand.hbm [shape: bf16[8,32], index: 0, kind: input, shape index: {}]
  %s1 = inlined_call_operand.hbm [shape: bf16[32,32], index: 1, kind: input, shape index: {}]
  %s2 = inlined_call_operand.vmem [shape: f32[1,32], index: 2, kind: input, shape index: {}]
  %s3 = inlined_call_operand.hbm [shape: bf16[8,32], index: 3, kind: output, shape index: {}]
  %s4 = sld [smem:[#allocation0]]
  $region30: #{tpu_custom_call.1} parent=0
    _
  %s6 = ssub.s32 1, %s4
  %s7 = scalar_select 0, %s6, %s4
  $region1: #{tpu_custom_call.1} parent=0
    #allocation2 [shape = 'u8[2048]{0}', space=vmem, size = 0x800, scoped, tag = 'input window, operand 0, single buffered']
    #allocation3 [shape = 's32[1]{0}', space=sflag, size = 0x4, scoped, tag = 'scoped memory for tpu_custom_call.1']
    #allocation4 [shape = 's32[1]{0}', space=sflag, size = 0x4, scoped, tag = 'scoped memory for tpu_custom_call.1']
    #allocation5 [shape = 'u8[8192]{0}', space=vmem, size = 0x2000, scoped, tag = 'input window, operand 1, single buffered']
    #allocation6 [shape = 's32[1]{0}', space=sflag, size = 0x4, scoped, tag = 'scoped memory for tpu_custom_call.1']
    #allocation7 [shape = 'u8[2048]{0}', space=vmem, size = 0x800, scoped, tag = 'output window, operand 0, single buffered']
    %8 = vsyncpa [#allocation3], 0
    %9 = vsyncpa [#allocation6], 0
    %10 = vsyncpa [#allocation4], 0
    // Predicated region
    $region2: #{tpu_custom_call.1} parent=1 // pred_check
      _
    $region3: #{tpu_custom_call.1} parent=1 // pred_check_branch
      %12 = sbr.rel (0) target = $region5
    $region4: #{tpu_custom_call.1} parent=1 // pred_region
      %s14 = ssub.s32 64, 64
      %15 = vsyncadd [#allocation3], %s14
      %s17 = sshll.u32 [#allocation2], 4
      %s18 = int_to_ptr.vmem [resolvable:$true] %s17
      %20 = dma.hbm_to_vmem [thread:$0]  %s0, 64, %s18, [#allocation3]
    $region5: #{tpu_custom_call.1} parent=1 // pred_fallthru
      _
    // Predicated region
    $region6: #{tpu_custom_call.1} parent=1 // pred_check
      _
    $region7: #{tpu_custom_call.1} parent=1 // pred_check_branch
      %22 = sbr.rel (0) target = $region9
    $region8: #{tpu_custom_call.1} parent=1 // pred_region
      %s24 = ssub.s32 256, 256
      %25 = vsyncadd [#allocation6], %s24
      %s26 = sshll.u32 [#allocation5], 4
      %s27 = int_to_ptr.vmem [resolvable:$true] %s26
      %32 = dma.hbm_to_vmem [thread:$0]  %s1, 256, %s27, [#allocation6], 64, 64, 4
    $region9: #{tpu_custom_call.1} parent=1 // pred_fallthru
      _
    // Predicated region
    $region10: #{tpu_custom_call.1} parent=1 // pred_check
      _
    $region11: #{tpu_custom_call.1} parent=1 // pred_check_branch
      %34 = sbr.rel (0) target = $region13
    $region12: #{tpu_custom_call.1} parent=1 // pred_region
      _
    $region13: #{tpu_custom_call.1} parent=1 // pred_fallthru
      _
    // Predicated region
    $region14: #{tpu_custom_call.1} parent=1 // pred_check
      _
    $region15: #{tpu_custom_call.1} parent=1 // pred_check_branch
      %36 = sbr.rel (0) target = $region17
    $region16: #{tpu_custom_call.1} parent=1 // pred_region
      %37 = dma.done [#allocation3], 64
    $region17: #{tpu_custom_call.1} parent=1 // pred_fallthru
      _
    // Predicated region
    $region18: #{tpu_custom_call.1} parent=1 // pred_check
      _
    $region19: #{tpu_custom_call.1} parent=1 // pred_check_branch
      %39 = sbr.rel (0) target = $region21
    $region20: #{tpu_custom_call.1} parent=1 // pred_region
      %40 = dma.done [#allocation6], 256
    $region21: #{tpu_custom_call.1} parent=1 // pred_fallthru
      _
    %v42 = vld [vmem:[#allocation2] sm:$0xf]
    %v43 = vld [vmem:[#allocation5] sm:$0xf]
    %v44 = vld [vmem:[#allocation5 + $0x4] sm:$0xf]
    %v45 = vld [vmem:[#allocation5 + $0x8] sm:$0xf]
    %v46 = vld [vmem:[#allocation5 + $0xc] sm:$0xf]
    %v47 = vld [vmem:[%s2] sm:$0x1]
    %v49 = vlaneseq
    %v50 = vshrl.u32 %v49, 7
    %v51 = vsub.s32 0, %v50
    %v52 = vrot.slane %v47, %v51
    %v58 = vunpack.c.l.b16 %v43
    %v59 = vunpack.c.l.b16 %v44
    %v60 = vunpack.c.l.b16 %v45
    %v61 = vunpack.c.l.b16 %v46
    %v62 = vpack.c.b16 %v59, %v58
    %v63 = vpack.c.b16 %v61, %v60
    %vm66 = vcmask 261120
    %v68 = vsel %vm66, %v42, 0
    %70 = vmatprep.subr.bf16.mxu0 0
    %71 = vmatpush1.bf16.msra.mxu0 %v62
    %72 = vmatprep.subr.bf16.mxu0 0
    %73 = vmatpush1.bf16.msra.mxu0 %v63
    %74 = vmatprep.subr.bf16.mxu0 0
    %75 = vmatpush1.bf16.msra.mxu0 0
    %76 = vmatprep.subr.bf16.mxu0 0
    %77 = vmatpush1.bf16.msra.mxu0 0
    %78 = vmatprep.subr.bf16.mxu0 0
    %79 = vmatpush1.bf16.msra.mxu0 0
    %80 = vmatprep.subr.bf16.mxu0 0
    %81 = vmatpush1.bf16.msra.mxu0 0
    %82 = vmatprep.subr.bf16.mxu0 0
    %83 = vmatpush1.bf16.msra.mxu0 0
    %84 = vmatprep.subr.bf16.mxu0 0
    %85 = vmatpush1.bf16.msra.mxu0 0
    %86 = vmatprep.subr.bf16.mxu0 0
    %87 = vmatpush1.bf16.msra.mxu0 0
    %88 = vmatprep.subr.bf16.mxu0 0
    %89 = vmatpush1.bf16.msra.mxu0 0
    %90 = vmatprep.subr.bf16.mxu0 0
    %91 = vmatpush1.bf16.msra.mxu0 0
    %92 = vmatprep.subr.bf16.mxu0 0
    %93 = vmatpush1.bf16.msra.mxu0 0
    %94 = vmatprep.subr.bf16.mxu0 0
    %95 = vmatpush1.bf16.msra.mxu0 0
    %96 = vmatprep.subr.bf16.mxu0 0
    %97 = vmatpush1.bf16.msra.mxu0 0
    %98 = vmatprep.subr.bf16.mxu0 0
    %99 = vmatpush1.bf16.msra.mxu0 0
    %100 = vmatprep.subr.bf16.mxu0 0
    %101 = vmatpush1.bf16.msra.mxu0 0
    %102 = vmatprep.mubr.bf16.mxu0 0
    %103 = vmatmul.mubr.bf16.gmra.mrb[0].mxu0 %v68
    %v104 = vpop.f32.mrb[0].mxu0
    %v105 = vadd.f32 %v52, %v104
    %v106 = vpop.f32.mrb[0].mxu0
    %v107 = vpop.f32.mrb[0].mxu0
    %v108 = vpop.f32.mrb[0].mxu0
    %109 = vdwg.mxu0
    %v110 = vtanh.pop %v105
    %v111 = vpack.c.bf16 %v110, %v110
    %vm112 = vcmask 257024
    %113 = vst.msk [vmem:[#allocation7] sm:$0xf] %vm112, %v111
    // Predicated region
    $region22: #{tpu_custom_call.1} parent=1 // pred_check
      _
    $region23: #{tpu_custom_call.1} parent=1 // pred_check_branch
      %115 = sbr.rel (0) target = $region25
    $region24: #{tpu_custom_call.1} parent=1 // pred_region
      %s117 = ssub.s32 64, 64
      %118 = vsyncadd [#allocation4], %s117
      %s120 = sshll.u32 [#allocation7], 4
      %s121 = int_to_ptr.vmem [resolvable:$true] %s120
      %123 = dma.vmem_to_hbm [thread:$0]  %s121, 64, %s3, [#allocation4]
    $region25: #{tpu_custom_call.1} parent=1 // pred_fallthru
      _
    // Predicated region
    $region26: #{tpu_custom_call.1} parent=1 // pred_check
      _
    $region27: #{tpu_custom_call.1} parent=1 // pred_check_branch
      %125 = sbr.rel (0) target = $region29
    $region28: #{tpu_custom_call.1} parent=1 // pred_region
      %126 = dma.done [#allocation4], 64
    $region29: #{tpu_custom_call.1} parent=1 // pred_fallthru
      _
    %127 = vsyncpa [#allocation3], 1
    %128 = vsyncpa [#allocation6], 1
    %129 = vsyncpa [#allocation4], 1

</llo_original>
